<compile_context>
chip_gen: v7x
topology: tpu7x:2x2x1
jax: 0.10.0
libtpu: 0.0.40
codegen_flags: <defaults>
</compile_context>

<pallas_src>
import jax
import jax.numpy as jnp
from jax.experimental import pallas as pl
from jax.experimental.pallas import tpu as pltpu

HIDDEN = 256            # per-head hidden width (nn.Linear(n_features, 256))
FUSED_H = 2 * HIDDEN    # actor + critic hidden concatenated


def actor_critic_kernel(x_ref, w1_ref, w2_ref, b1_ref, b2_ref,
                        pi_ref, v_ref, acc_ref):
    """One (batch-tile, K-tile) grid step of the fused actor+critic forward.

    x_ref  : (TB, TK)       state tile (f32 or bf16, same dtype as weights)
    w1_ref : (TK, 512)      K-tile of [wa1 | wc1]
    w2_ref : (512, A+1)     block-diag(wa2, wc2), unpadded   (resident)
    b1_ref : (1, 512)       [ba1 | bc1], f32                 (resident)
    b2_ref : (1, A+1)       [ba2 | bc2], f32                 (resident)
    pi_ref : (TB, A)        actor logits output block
    v_ref  : (TB, 1)        critic value output block
    acc_ref: (TB, 512) f32  layer-1 accumulator across K tiles
    """
    k = pl.program_id(1)

    @pl.when(k == 0)
    def _init():
        acc_ref[...] = jnp.zeros_like(acc_ref)

    # Layer 1 (both heads): accumulate this K slice in f32 on the MXU.
    acc_ref[...] += jnp.dot(x_ref[...], w1_ref[...],
                            preferred_element_type=jnp.float32)

    @pl.when(k == pl.num_programs(1) - 1)
    def _finalize():
        # f32 bias add + ReLU (v5e VPU has no bf16 elementwise).
        h = jnp.maximum(acc_ref[...] + b1_ref[...], 0.0)
        # NOTE: bf16 weight path re-quantizes h (f32 -> bf16) before the
        # second MXU pass; small extra error vs the f32 PyTorch reference.
        out2 = jnp.dot(h.astype(w2_ref.dtype), w2_ref[...],
                       preferred_element_type=jnp.float32) + b2_ref[...]
        n_actions = pi_ref.shape[-1]
        pi_ref[...] = out2[:, :n_actions]
        v_ref[...] = out2[:, n_actions:]


def _round_up(x, m):
    return ((x + m - 1) // m) * m


def _batch_tiles(B, tile_b, split_threshold=512):
    """Pick (tb, b_pad, n_tiles) minimizing pad waste; split for v7x megacore."""
    n = max(1, -(-B // tile_b))                 # cdiv(B, tile_b)
    if n == 1 and B >= split_threshold:
        n = 2                                   # give v7x's 2nd TC a tile
    tb = _round_up(-(-B // n), 8)               # round_up(cdiv(B, n), 8)
    return tb, tb * n, n


def pack_params(p, n_actions, weight_dtype=jnp.float32, max_tile_k=512):
    """Fuse the 8 Linear params into (W1, W2, b1, b2). Biases stay f32.

    For F > max_tile_k, W1 rows are zero-padded to a multiple of the K tile
    so layer 1 can be accumulated over a reduction grid axis (v7x VMEM).
    """
    F = p["wa1"].shape[0]
    A = n_actions

    w1 = jnp.concatenate([p["wa1"], p["wc1"]], axis=1)          # (F, 512)
    if F <= max_tile_k:
        tk, f_pad = F, F                                        # no F padding
    else:
        tk = max(128, (max_tile_k // 128) * 128)                # lane-aligned K tile
        f_pad = _round_up(F, tk)
        w1 = jnp.pad(w1, ((0, f_pad - F), (0, 0)))
    w1 = w1.astype(weight_dtype)

    # Unpadded block-diagonal layer-2 weight: (512, A+1) = [wa2 | 0; 0 | wc2].
    w2 = jnp.zeros((FUSED_H, A + 1), jnp.float32)
    w2 = w2.at[:HIDDEN, :A].set(p["wa2"])
    w2 = w2.at[HIDDEN:, A:].set(p["wc2"])
    w2 = w2.astype(weight_dtype)

    b1 = jnp.concatenate([p["ba1"], p["bc1"]], axis=1).astype(jnp.float32)  # (1, 512)
    b2 = jnp.concatenate([p["ba2"], p["bc2"]], axis=1).astype(jnp.float32)  # (1, A+1)

    return dict(w1=w1, w2=w2, b1=b1, b2=b2,
                n_features=F, f_pad=f_pad, tile_k=tk, n_actions=A)


def actor_critic_forward(state, packed, *, tile_b=1024):
    """state: (B, n_features). Returns (pi: (B, n_actions), value: (B, 1)) f32.

    Keep tile_b <= 1024 on v5e (16 MiB scoped VMEM) unless vmem_limit_bytes
    is raised explicitly.
    """
    B, F = state.shape
    assert F == packed["n_features"], "state feature dim mismatch"
    A = packed["n_actions"]
    w1, w2, b1, b2 = packed["w1"], packed["w2"], packed["b1"], packed["b2"]
    f_pad, tk = packed["f_pad"], packed["tile_k"]

    # Stream state at the weight dtype (bf16 halves the dominant HBM read).
    x = state.astype(w1.dtype)
    if f_pad != F:
        x = jnp.pad(x, ((0, 0), (0, f_pad - F)))

    tb, b_pad, n_b = _batch_tiles(B, tile_b)
    if b_pad != B:
        x = jnp.pad(x, ((0, b_pad - B), (0, 0)))
    n_k = f_pad // tk
    grid = (n_b, n_k)

    f32_bytes = 4
    cost = pl.CostEstimate(
        flops=2 * b_pad * (f_pad * FUSED_H + FUSED_H * (A + 1)),
        transcendentals=0,
        bytes_accessed=(x.size * x.dtype.itemsize
                        + n_b * w1.size * w1.dtype.itemsize   # W1 re-streamed per batch tile
                        + w2.size * w2.dtype.itemsize
                        + (b1.size + b2.size) * f32_bytes
                        + b_pad * (A + 1) * f32_bytes),
    )

    def run(single_buffer_resident):
        def const_spec(shape):
            imap = lambda i, k: (0, 0)
            if single_buffer_resident:
                # Constant index_map -> double-buffering buys nothing.
                return pl.BlockSpec(shape, imap, pipeline_mode=pl.Buffered(1))
            return pl.BlockSpec(shape, imap)

        grid_spec = pltpu.PrefetchScalarGridSpec(
            num_scalar_prefetch=0,
            grid=grid,
            in_specs=[
                pl.BlockSpec((tb, tk), lambda i, k: (i, k)),       # state tile
                pl.BlockSpec((tk, FUSED_H), lambda i, k: (k, 0)),  # W1 K-tile (dbl-buffered)
                const_spec((FUSED_H, A + 1)),                      # W2 resident
                const_spec((1, FUSED_H)),                          # b1 resident
                const_spec((1, A + 1)),                            # b2 resident
            ],
            out_specs=[
                pl.BlockSpec((tb, A), lambda i, k: (i, 0)),        # pi
                pl.BlockSpec((tb, 1), lambda i, k: (i, 0)),        # value
            ],
            scratch_shapes=[pltpu.VMEM((tb, FUSED_H), jnp.float32)],
        )
        return pl.pallas_call(
            actor_critic_kernel,
            out_shape=(jax.ShapeDtypeStruct((b_pad, A), jnp.float32),
                       jax.ShapeDtypeStruct((b_pad, 1), jnp.float32)),
            grid_spec=grid_spec,
            compiler_params=pltpu.CompilerParams(
                dimension_semantics=("parallel", "arbitrary")),
            cost_estimate=cost,
        )(x, w1, w2, b1, b2)

    try:
        pi_pad, v_pad = run(True)
    except Exception:
        # pl.Buffered(1) not supported by this jax/libtpu -> default buffering.
        pi_pad, v_pad = run(False)

    return pi_pad[:B], v_pad[:B]


def init_params(key, n_features, n_actions):
    """Deterministic init mimicking nn.Linear's U(-1/sqrt(fan_in), 1/sqrt(fan_in))."""
    ks = jax.random.split(key, 8)

    def lin(kw, kb, fan_in, fan_out):
        bound = 1.0 / jnp.sqrt(jnp.float32(fan_in))
        w = jax.random.uniform(kw, (fan_in, fan_out), jnp.float32, -bound, bound)
        b = jax.random.uniform(kb, (1, fan_out), jnp.float32, -bound, bound)
        return w, b

    wa1, ba1 = lin(ks[0], ks[1], n_features, HIDDEN)
    wa2, ba2 = lin(ks[2], ks[3], HIDDEN, n_actions)
    wc1, bc1 = lin(ks[4], ks[5], n_features, HIDDEN)
    wc2, bc2 = lin(ks[6], ks[7], HIDDEN, 1)
    return dict(wa1=wa1, ba1=ba1, wa2=wa2, ba2=ba2,
                wc1=wc1, bc1=bc1, wc2=wc2, bc2=bc2)


def reference_forward(state, p):
    ha = jnp.maximum(state @ p["wa1"] + p["ba1"], 0.0)
    pi = ha @ p["wa2"] + p["ba2"]
    hc = jnp.maximum(state @ p["wc1"] + p["bc1"], 0.0)
    v = hc @ p["wc2"] + p["bc2"]
    return pi, v


if __name__ == "__main__":
    key = jax.random.PRNGKey(0)
    n_features, n_actions = 32, 8

    k_param, k_state, k_state2, k_state3, k_param2, k_state4 = jax.random.split(key, 6)
    params = init_params(k_param, n_features, n_actions)
    packed = pack_params(params, n_actions)

    # --- 1) f32 weights, tiny per-env-step batch (single tile) ---
    batch = 8
    state = jax.random.normal(k_state, (batch, n_features), jnp.float32)
    pi, value = actor_critic_forward(state, packed)
    jax.block_until_ready((pi, value))
    pi_ref, v_ref = reference_forward(state, params)
    assert pi.shape == (batch, n_actions) and value.shape == (batch, 1)
    assert jnp.allclose(pi, pi_ref, atol=1e-5, rtol=1e-5)
    assert jnp.allclose(value, v_ref, atol=1e-5, rtol=1e-5)

    # --- 2) multi-tile batch grid + ragged batch (exercises batch padding) ---
    batch2 = 40
    state2 = jax.random.normal(k_state2, (batch2, n_features), jnp.float32)
    pi2, v2 = actor_critic_forward(state2, packed, tile_b=16)
    jax.block_until_ready((pi2, v2))
    pi2_ref, v2_ref = reference_forward(state2, params)
    assert pi2.shape == (batch2, n_actions) and v2.shape == (batch2, 1)
    assert jnp.allclose(pi2, pi2_ref, atol=1e-5, rtol=1e-5)
    assert jnp.allclose(v2, v2_ref, atol=1e-5, rtol=1e-5)

    # --- 3) large-B single-call path: forced 2-way split (v7x megacore) ---
    batch3 = 600
    state3 = jax.random.normal(k_state3, (batch3, n_features), jnp.float32)
    pi3, v3 = actor_critic_forward(state3, packed)   # tile_b=1024 -> split into 2 tiles
    jax.block_until_ready((pi3, v3))
    pi3_ref, v3_ref = reference_forward(state3, params)
    assert jnp.allclose(pi3, pi3_ref, atol=1e-5, rtol=1e-5)
    assert jnp.allclose(v3, v3_ref, atol=1e-5, rtol=1e-5)

    # --- 4) bf16 weight + bf16 state streaming (v6e/v7x MXU path) ---
    packed_bf16 = pack_params(params, n_actions, weight_dtype=jnp.bfloat16)
    pi4, v4 = actor_critic_forward(state, packed_bf16)
    jax.block_until_ready((pi4, v4))
    assert jnp.allclose(pi4, pi_ref, atol=1e-1, rtol=1e-1)
    assert jnp.allclose(v4, v_ref, atol=1e-1, rtol=1e-1)

    # --- 5) large-F path: K-tiled layer 1 with F padding (v7x VMEM safety) ---
    big_f = 300
    params_big = init_params(k_param2, big_f, n_actions)
    packed_big = pack_params(params_big, n_actions, max_tile_k=128)   # 3 K-steps
    state5 = jax.random.normal(k_state4, (24, big_f), jnp.float32)
    pi5, v5 = actor_critic_forward(state5, packed_big)
    jax.block_until_ready((pi5, v5))
    pi5_ref, v5_ref = reference_forward(state5, params_big)
    assert jnp.allclose(pi5, pi5_ref, atol=1e-4, rtol=1e-4)
    assert jnp.allclose(v5, v5_ref, atol=1e-4, rtol=1e-4)

    print("KERNEL_OK")
</pallas_src>

<mosaic_0001>
module attributes {stable_mosaic.version = 11 : i64} {
  func.func @actor_critic_kernel(%arg0: i32, %arg1: i32, %arg2: memref<8x32xf32, #tpu.memory_space<vmem>>, %arg3: memref<32x512xf32, #tpu.memory_space<vmem>>, %arg4: memref<512x9xf32, #tpu.memory_space<vmem>>, %arg5: memref<1x512xf32, #tpu.memory_space<vmem>>, %arg6: memref<1x9xf32, #tpu.memory_space<vmem>>, %arg7: memref<8x8xf32, #tpu.memory_space<vmem>>, %arg8: memref<8x1xf32, #tpu.memory_space<vmem>>, %arg9: memref<8x512xf32, #tpu.memory_space<vmem>>) attributes {dimension_semantics = [#tpu.dimension_semantics<parallel>, #tpu.dimension_semantics<arbitrary>], iteration_bounds = array<i64: 1, 1>, scalar_prefetch = 0 : i64, scratch_operands = 1 : i64, tpu.core_type = #tpu.core_type<tc>, window_params = [{transform_indices = @transform_0, window_bounds = array<i64: 8, 32>}, {transform_indices = @transform_1, window_bounds = array<i64: 32, 512>}, {pipeline_mode = #tpu.pipeline_mode<synchronous>, transform_indices = @transform_2, window_bounds = array<i64: 512, 9>}, {pipeline_mode = #tpu.pipeline_mode<synchronous>, transform_indices = @transform_3, window_bounds = array<i64: 1, 512>}, {pipeline_mode = #tpu.pipeline_mode<synchronous>, transform_indices = @transform_4, window_bounds = array<i64: 1, 9>}, {transform_indices = @transform_5, window_bounds = array<i64: 8, 8>}, {transform_indices = @transform_6, window_bounds = array<i64: 8, 1>}]} {
    %c0_i32 = arith.constant 0 : i32
    %0 = arith.cmpi eq, %arg1, %c0_i32 : i32
    %1 = arith.extui %0 : i1 to i32
    %c0_i32_0 = arith.constant 0 : i32
    %2 = arith.cmpi ne, %1, %c0_i32_0 : i32
    scf.if %2 {
      %cst_10 = arith.constant 0.000000e+00 : f32
      %12 = vector.broadcast %cst_10 : f32 to vector<8x512xf32>
      %c0_11 = arith.constant 0 : index
      %c0_12 = arith.constant 0 : index
      %13 = vector.load %arg9[%c0_11, %c0_12] : memref<8x512xf32, #tpu.memory_space<vmem>>, vector<8x512xf32>
      tpu.vector_store %arg9[%c0_11, %c0_12], %12 {strides = array<i32>} : memref<8x512xf32, #tpu.memory_space<vmem>>, vector<8x512xf32>,
    } else {
    }
    %c0 = arith.constant 0 : index
    %c0_1 = arith.constant 0 : index
    %3 = vector.load %arg9[%c0, %c0_1] : memref<8x512xf32, #tpu.memory_space<vmem>>, vector<8x512xf32>
    %c0_2 = arith.constant 0 : index
    %c0_3 = arith.constant 0 : index
    %4 = vector.load %arg2[%c0_2, %c0_3] : memref<8x32xf32, #tpu.memory_space<vmem>>, vector<8x32xf32>
    %c0_4 = arith.constant 0 : index
    %c0_5 = arith.constant 0 : index
    %5 = vector.load %arg3[%c0_4, %c0_5] : memref<32x512xf32, #tpu.memory_space<vmem>>, vector<32x512xf32>
    %cst = arith.constant dense<0.000000e+00> : vector<8x512xf32>
    %6 = tpu.matmul %4, %5, %cst {dimension_numbers = #tpu.dot_dimension_numbers<[1], [0], [0], [1], [0, 0, 1, 1], [], []>} : vector<8x32xf32>, vector<32x512xf32>, vector<8x512xf32> -> vector<8x512xf32>
    %7 = arith.addf %3, %6 : vector<8x512xf32>
    %c0_6 = arith.constant 0 : index
    %c0_7 = arith.constant 0 : index
    %8 = vector.load %arg9[%c0_6, %c0_7] : memref<8x512xf32, #tpu.memory_space<vmem>>, vector<8x512xf32>
    tpu.vector_store %arg9[%c0_6, %c0_7], %7 {strides = array<i32>} : memref<8x512xf32, #tpu.memory_space<vmem>>, vector<8x512xf32>,
    %c0_i32_8 = arith.constant 0 : i32
    %9 = arith.cmpi eq, %arg1, %c0_i32_8 : i32
    %10 = arith.extui %9 : i1 to i32
    %c0_i32_9 = arith.constant 0 : i32
    %11 = arith.cmpi ne, %10, %c0_i32_9 : i32
    scf.if %11 {
      %c0_10 = arith.constant 0 : index
      %c0_11 = arith.constant 0 : index
      %12 = vector.load %arg9[%c0_10, %c0_11] : memref<8x512xf32, #tpu.memory_space<vmem>>, vector<8x512xf32>
      %c0_12 = arith.constant 0 : index
      %c0_13 = arith.constant 0 : index
      %13 = vector.load %arg5[%c0_12, %c0_13] : memref<1x512xf32, #tpu.memory_space<vmem>>, vector<1x512xf32>
      %14 = vector.broadcast %13 : vector<1x512xf32> to vector<8x512xf32>
      %15 = arith.addf %12, %14 : vector<8x512xf32>
      %cst_14 = arith.constant 0.000000e+00 : f32
      %16 = vector.broadcast %cst_14 : f32 to vector<8x512xf32>
      %17 = arith.maximumf %15, %16 : vector<8x512xf32>
      %c0_15 = arith.constant 0 : index
      %c0_16 = arith.constant 0 : index
      %18 = vector.load %arg4[%c0_15, %c0_16] : memref<512x9xf32, #tpu.memory_space<vmem>>, vector<512x9xf32>
      %cst_17 = arith.constant dense<0.000000e+00> : vector<8x9xf32>
      %19 = tpu.matmul %17, %18, %cst_17 {dimension_numbers = #tpu.dot_dimension_numbers<[1], [0], [0], [1], [0, 0, 1, 1], [], []>} : vector<8x512xf32>, vector<512x9xf32>, vector<8x9xf32> -> vector<8x9xf32>
      %c0_18 = arith.constant 0 : index
      %c0_19 = arith.constant 0 : index
      %20 = vector.load %arg6[%c0_18, %c0_19] : memref<1x9xf32, #tpu.memory_space<vmem>>, vector<1x9xf32>
      %21 = vector.broadcast %20 : vector<1x9xf32> to vector<8x9xf32>
      %22 = arith.addf %19, %21 : vector<8x9xf32>
      %23 = vector.extract_strided_slice %22 {offsets = [0, 0], sizes = [8, 8], strides = [1, 1]} : vector<8x9xf32> to vector<8x8xf32>
      %c0_20 = arith.constant 0 : index
      %c0_21 = arith.constant 0 : index
      %24 = vector.load %arg7[%c0_20, %c0_21] : memref<8x8xf32, #tpu.memory_space<vmem>>, vector<8x8xf32>
      tpu.vector_store %arg7[%c0_20, %c0_21], %23 {strides = array<i32>} : memref<8x8xf32, #tpu.memory_space<vmem>>, vector<8x8xf32>,
      %25 = vector.extract_strided_slice %22 {offsets = [0, 8], sizes = [8, 1], strides = [1, 1]} : vector<8x9xf32> to vector<8x1xf32>
      %c0_22 = arith.constant 0 : index
      %c0_23 = arith.constant 0 : index
      %26 = vector.load %arg8[%c0_22, %c0_23] : memref<8x1xf32, #tpu.memory_space<vmem>>, vector<8x1xf32>
      tpu.vector_store %arg8[%c0_22, %c0_23], %25 {strides = array<i32>} : memref<8x1xf32, #tpu.memory_space<vmem>>, vector<8x1xf32>,
    } else {
    }
    return
  }
  func.func @transform_0(%arg0: i32, %arg1: i32) -> (i32, i32) {
    %c0_i32 = arith.constant 0 : i32
    return %arg0, %arg1 : i32, i32
  }
  func.func @transform_1(%arg0: i32, %arg1: i32) -> (i32, i32) {
    %c0_i32 = arith.constant 0 : i32
    %c0_i32_0 = arith.constant 0 : i32
    return %arg1, %c0_i32 : i32, i32
  }
  func.func @transform_2(%arg0: i32, %arg1: i32) -> (i32, i32) {
    %c0_i32 = arith.constant 0 : i32
    %c0_i32_0 = arith.constant 0 : i32
    %c0_i32_1 = arith.constant 0 : i32
    return %c0_i32, %c0_i32_0 : i32, i32
  }
  func.func @transform_3(%arg0: i32, %arg1: i32) -> (i32, i32) {
    %c0_i32 = arith.constant 0 : i32
    %c0_i32_0 = arith.constant 0 : i32
    %c0_i32_1 = arith.constant 0 : i32
    return %c0_i32, %c0_i32_0 : i32, i32
  }
  func.func @transform_4(%arg0: i32, %arg1: i32) -> (i32, i32) {
    %c0_i32 = arith.constant 0 : i32
    %c0_i32_0 = arith.constant 0 : i32
    %c0_i32_1 = arith.constant 0 : i32
    return %c0_i32, %c0_i32_0 : i32, i32
  }
  func.func @transform_5(%arg0: i32, %arg1: i32) -> (i32, i32) {
    %c0_i32 = arith.constant 0 : i32
    %c0_i32_0 = arith.constant 0 : i32
    return %arg0, %c0_i32 : i32, i32
  }
  func.func @transform_6(%arg0: i32, %arg1: i32) -> (i32, i32) {
    %c0_i32 = arith.constant 0 : i32
    %c0_i32_0 = arith.constant 0 : i32
    return %arg0, %c0_i32 : i32, i32
  }
}

module attributes {stable_mosaic.version = 11 : i64} {
  func.func @actor_critic_kernel(%arg0: i32, %arg1: i32, %arg2: memref<8x32xf32, #tpu.memory_space<vmem>>, %arg3: memref<32x512xf32, #tpu.memory_space<vmem>>, %arg4: memref<512x9xf32, #tpu.memory_space<vmem>>, %arg5: memref<1x512xf32, #tpu.memory_space<vmem>>, %arg6: memref<1x9xf32, #tpu.memory_space<vmem>>, %arg7: memref<8x8xf32, #tpu.memory_space<vmem>>, %arg8: memref<8x1xf32, #tpu.memory_space<vmem>>, %arg9: memref<8x512xf32, #tpu.memory_space<vmem>>) attributes {dimension_semantics = [#tpu.dimension_semantics<parallel>, #tpu.dimension_semantics<arbitrary>], iteration_bounds = array<i64: 1, 1>, scalar_prefetch = 0 : i64, scratch_operands = 1 : i64, tpu.core_type = #tpu.core_type<tc>, window_params = [{transform_indices = @transform_0, window_bounds = array<i64: 8, 32>}, {transform_indices = @transform_1, window_bounds = array<i64: 32, 512>}, {pipeline_mode = #tpu.pipeline_mode<synchronous>, transform_indices = @transform_2, window_bounds = array<i64: 512, 9>}, {pipeline_mode = #tpu.pipeline_mode<synchronous>, transform_indices = @transform_3, window_bounds = array<i64: 1, 512>}, {pipeline_mode = #tpu.pipeline_mode<synchronous>, transform_indices = @transform_4, window_bounds = array<i64: 1, 9>}, {transform_indices = @transform_5, window_bounds = array<i64: 8, 8>}, {transform_indices = @transform_6, window_bounds = array<i64: 8, 1>}]} {
    %c0_i32 = arith.constant 0 : i32
    %0 = arith.cmpi eq, %arg1, %c0_i32 : i32
    %1 = arith.extui %0 : i1 to i32
    %c0_i32_0 = arith.constant 0 : i32
    %2 = arith.cmpi ne, %1, %c0_i32_0 : i32
    scf.if %2 {
      %cst_10 = arith.constant 0.000000e+00 : f32
      %12 = vector.broadcast %cst_10 : f32 to vector<8x512xf32>
      %c0_11 = arith.constant 0 : index
      %c0_12 = arith.constant 0 : index
      %13 = vector.load %arg9[%c0_11, %c0_12] : memref<8x512xf32, #tpu.memory_space<vmem>>, vector<8x512xf32>
      tpu.vector_store %arg9[%c0_11, %c0_12], %12 {strides = array<i32>} : memref<8x512xf32, #tpu.memory_space<vmem>>, vector<8x512xf32>,
    } else {
    }
    %c0 = arith.constant 0 : index
    %c0_1 = arith.constant 0 : index
    %3 = vector.load %arg9[%c0, %c0_1] : memref<8x512xf32, #tpu.memory_space<vmem>>, vector<8x512xf32>
    %c0_2 = arith.constant 0 : index
    %c0_3 = arith.constant 0 : index
    %4 = vector.load %arg2[%c0_2, %c0_3] : memref<8x32xf32, #tpu.memory_space<vmem>>, vector<8x32xf32>
    %c0_4 = arith.constant 0 : index
    %c0_5 = arith.constant 0 : index
    %5 = vector.load %arg3[%c0_4, %c0_5] : memref<32x512xf32, #tpu.memory_space<vmem>>, vector<32x512xf32>
    %cst = arith.constant dense<0.000000e+00> : vector<8x512xf32>
    %6 = tpu.matmul %4, %5, %cst {dimension_numbers = #tpu.dot_dimension_numbers<[1], [0], [0], [1], [0, 0, 1, 1], [], []>} : vector<8x32xf32>, vector<32x512xf32>, vector<8x512xf32> -> vector<8x512xf32>
    %7 = arith.addf %3, %6 : vector<8x512xf32>
    %c0_6 = arith.constant 0 : index
    %c0_7 = arith.constant 0 : index
    %8 = vector.load %arg9[%c0_6, %c0_7] : memref<8x512xf32, #tpu.memory_space<vmem>>, vector<8x512xf32>
    tpu.vector_store %arg9[%c0_6, %c0_7], %7 {strides = array<i32>} : memref<8x512xf32, #tpu.memory_space<vmem>>, vector<8x512xf32>,
    %c0_i32_8 = arith.constant 0 : i32
    %9 = arith.cmpi eq, %arg1, %c0_i32_8 : i32
    %10 = arith.extui %9 : i1 to i32
    %c0_i32_9 = arith.constant 0 : i32
    %11 = arith.cmpi ne, %10, %c0_i32_9 : i32
    scf.if %11 {
      %c0_10 = arith.constant 0 : index
      %c0_11 = arith.constant 0 : index
      %12 = vector.load %arg9[%c0_10, %c0_11] : memref<8x512xf32, #tpu.memory_space<vmem>>, vector<8x512xf32>
      %c0_12 = arith.constant 0 : index
      %c0_13 = arith.constant 0 : index
      %13 = vector.load %arg5[%c0_12, %c0_13] : memref<1x512xf32, #tpu.memory_space<vmem>>, vector<1x512xf32>
      %14 = vector.broadcast %13 : vector<1x512xf32> to vector<8x512xf32>
      %15 = arith.addf %12, %14 : vector<8x512xf32>
      %cst_14 = arith.constant 0.000000e+00 : f32
      %16 = vector.broadcast %cst_14 : f32 to vector<8x512xf32>
      %17 = arith.maximumf %15, %16 : vector<8x512xf32>
      %c0_15 = arith.constant 0 : index
      %c0_16 = arith.constant 0 : index
      %18 = vector.load %arg4[%c0_15, %c0_16] : memref<512x9xf32, #tpu.memory_space<vmem>>, vector<512x9xf32>
      %cst_17 = arith.constant dense<0.000000e+00> : vector<8x9xf32>
      %19 = tpu.matmul %17, %18, %cst_17 {dimension_numbers = #tpu.dot_dimension_numbers<[1], [0], [0], [1], [0, 0, 1, 1], [], []>} : vector<8x512xf32>, vector<512x9xf32>, vector<8x9xf32> -> vector<8x9xf32>
      %c0_18 = arith.constant 0 : index
      %c0_19 = arith.constant 0 : index
      %20 = vector.load %arg6[%c0_18, %c0_19] : memref<1x9xf32, #tpu.memory_space<vmem>>, vector<1x9xf32>
      %21 = vector.broadcast %20 : vector<1x9xf32> to vector<8x9xf32>
      %22 = arith.addf %19, %21 : vector<8x9xf32>
      %23 = vector.extract_strided_slice %22 {offsets = [0, 0], sizes = [8, 8], strides = [1, 1]} : vector<8x9xf32> to vector<8x8xf32>
      %c0_20 = arith.constant 0 : index
      %c0_21 = arith.constant 0 : index
      %24 = vector.load %arg7[%c0_20, %c0_21] : memref<8x8xf32, #tpu.memory_space<vmem>>, vector<8x8xf32>
      tpu.vector_store %arg7[%c0_20, %c0_21], %23 {strides = array<i32>} : memref<8x8xf32, #tpu.memory_space<vmem>>, vector<8x8xf32>,
      %25 = vector.extract_strided_slice %22 {offsets = [0, 8], sizes = [8, 1], strides = [1, 1]} : vector<8x9xf32> to vector<8x1xf32>
      %c0_22 = arith.constant 0 : index
      %c0_23 = arith.constant 0 : index
      %26 = vector.load %arg8[%c0_22, %c0_23] : memref<8x1xf32, #tpu.memory_space<vmem>>, vector<8x1xf32>
      tpu.vector_store %arg8[%c0_22, %c0_23], %25 {strides = array<i32>} : memref<8x1xf32, #tpu.memory_space<vmem>>, vector<8x1xf32>,
    } else {
    }
    return
  }
  func.func @transform_0(%arg0: i32, %arg1: i32) -> (i32, i32) {
    %c0_i32 = arith.constant 0 : i32
    return %arg0, %arg1 : i32, i32
  }
  func.func @transform_1(%arg0: i32, %arg1: i32) -> (i32, i32) {
    %c0_i32 = arith.constant 0 : i32
    %c0_i32_0 = arith.constant 0 : i32
    return %arg1, %c0_i32 : i32, i32
  }
  func.func @transform_2(%arg0: i32, %arg1: i32) -> (i32, i32) {
    %c0_i32 = arith.constant 0 : i32
    %c0_i32_0 = arith.constant 0 : i32
    %c0_i32_1 = arith.constant 0 : i32
    return %c0_i32, %c0_i32_0 : i32, i32
  }
  func.func @transform_3(%arg0: i32, %arg1: i32) -> (i32, i32) {
    %c0_i32 = arith.constant 0 : i32
    %c0_i32_0 = arith.constant 0 : i32
    %c0_i32_1 = arith.constant 0 : i32
    return %c0_i32, %c0_i32_0 : i32, i32
  }
  func.func @transform_4(%arg0: i32, %arg1: i32) -> (i32, i32) {
    %c0_i32 = arith.constant 0 : i32
    %c0_i32_0 = arith.constant 0 : i32
    %c0_i32_1 = arith.constant 0 : i32
    return %c0_i32, %c0_i32_0 : i32, i32
  }
  func.func @transform_5(%arg0: i32, %arg1: i32) -> (i32, i32) {
    %c0_i32 = arith.constant 0 : i32
    %c0_i32_0 = arith.constant 0 : i32
    return %arg0, %c0_i32 : i32, i32
  }
  func.func @transform_6(%arg0: i32, %arg1: i32) -> (i32, i32) {
    %c0_i32 = arith.constant 0 : i32
    %c0_i32_0 = arith.constant 0 : i32
    return %arg0, %c0_i32 : i32, i32
  }
}

</mosaic_0001>

<llo_original>
// kernel: tpu_custom_call.1
$region0: #{tpu_custom_call.1}
  #allocation0 [shape = 'u32[]', space=smem, size = 0x4, offset = 0x4, fixed_abs, tag = 'smem constant byte address 0x4 - core index']
  #allocation1 [shape = 'u32[144,128]{1,0:T(1,128)}', space=vmem, size = 0x12000, scoped, tag = 'internal scratch']
  #allocation2 [shape = 'f32[8,512]{1,0:T(8,128)}', space=vmem, size = 0x4000, scoped, tag = 'scratch operand']
  %s0 = inlined_call_operand.vmem [shape: f32[8,32], index: 0, kind: input, shape index: {}]
  %s1 = inlined_call_operand.vmem [shape: f32[32,512], index: 1, kind: input, shape index: {}]
  %s2 = inlined_call_operand.vmem [shape: f32[512,9], index: 2, kind: input, shape index: {}]
  %s3 = inlined_call_operand.vmem [shape: f32[1,512], index: 3, kind: input, shape index: {}]
  %s4 = inlined_call_operand.vmem [shape: f32[1,9], index: 4, kind: input, shape index: {}]
  %s5 = inlined_call_operand.hbm [shape: f32[8,8], index: 5, kind: output, shape index: {0}]
  %s6 = inlined_call_operand.vmem [shape: f32[8,1], index: 6, kind: output, shape index: {1}]
  %7 = xla_tuple %s5, %s6
  %s8 = sld [smem:[#allocation0]]
  $region46: #{tpu_custom_call.1} parent=0
    _
  %s10 = ssub.s32 1, %s8
  %s11 = scalar_select 0, %s10, %s8
  $region1: #{tpu_custom_call.1} parent=0
    #allocation3 [shape = 'u8[4096]{0}', space=vmem, size = 0x1000, scoped, tag = 'output window, operand 0, single buffered']
    #allocation4 [shape = 's32[1]{0}', space=sflag, size = 0x4, scoped, tag = 'scoped memory for tpu_custom_call.1']
    %12 = vsyncpa [#allocation4], 0
    // Predicated region
    $region2: #{tpu_custom_call.1} parent=1 // pred_check
      _
    $region3: #{tpu_custom_call.1} parent=1 // pred_check_branch
      %14 = sbr.rel (0) target = $region5
    $region4: #{tpu_custom_call.1} parent=1 // pred_region
      _
    $region5: #{tpu_custom_call.1} parent=1 // pred_fallthru
      _
    // Predicated region
    $region6: #{tpu_custom_call.1} parent=1 // pred_check
      _
    $region7: #{tpu_custom_call.1} parent=1 // pred_check_branch
      %16 = sbr.rel (0) target = $region9
    $region8: #{tpu_custom_call.1} parent=1 // pred_region
      _
    $region9: #{tpu_custom_call.1} parent=1 // pred_fallthru
      _
    // Predicated region
    $region10: #{tpu_custom_call.1} parent=1 // pred_check
      _
    $region11: #{tpu_custom_call.1} parent=1 // pred_check_branch
      %18 = sbr.rel (0) target = $region13
    $region12: #{tpu_custom_call.1} parent=1 // pred_region
      _
    $region13: #{tpu_custom_call.1} parent=1 // pred_fallthru
      _
    // Predicated region
    $region14: #{tpu_custom_call.1} parent=1 // pred_check
      _
    $region15: #{tpu_custom_call.1} parent=1 // pred_check_branch
      %20 = sbr.rel (0) target = $region17
    $region16: #{tpu_custom_call.1} parent=1 // pred_region
      _
    $region17: #{tpu_custom_call.1} parent=1 // pred_fallthru
      _
    // Predicated region
    $region18: #{tpu_custom_call.1} parent=1 // pred_check
      _
    $region19: #{tpu_custom_call.1} parent=1 // pred_check_branch
      %22 = sbr.rel (0) target = $region21
    $region20: #{tpu_custom_call.1} parent=1 // pred_region
      _
    $region21: #{tpu_custom_call.1} parent=1 // pred_fallthru
      _
    %p23 = scmp.eq.s32.totalorder 0, 0
    // Predicated region
    $region22: #{tpu_custom_call.1} parent=1 // pred_check
      %p24 = pneg %p23
    $region23: #{tpu_custom_call.1} parent=1 // pred_check_branch
      %26 = sbr.rel (%p24) target = $region25
    $region24: #{tpu_custom_call.1} parent=1 // pred_region
      %27 = vst [vmem:[#allocation2] sm:$0xff] 0.0
      %28 = vst [vmem:[#allocation2 + $0x8] sm:$0xff] 0.0
      %29 = vst [vmem:[#allocation2 + $0x10] sm:$0xff] 0.0
      %30 = vst [vmem:[#allocation2 + $0x18] sm:$0xff] 0.0
    $region25: #{tpu_custom_call.1} parent=1 // pred_fallthru
      _
    %v31 = vld [vmem:[#allocation2] sm:$0xff]
    %v32 = vld [vmem:[#allocation2 + $0x8] sm:$0xff]
    %v33 = vld [vmem:[#allocation2 + $0x10] sm:$0xff]
    %v34 = vld [vmem:[#allocation2 + $0x18] sm:$0xff]
    %v35 = vld [vmem:[%s0] sm:$0xff]
    %v36 = vld [vmem:[%s1] sm:$0xff]
    %v37 = vld [vmem:[%s1 + $0x8] sm:$0xff]
    %v38 = vld [vmem:[%s1 + $0x10] sm:$0xff]
    %v39 = vld [vmem:[%s1 + $0x18] sm:$0xff]
    %v40 = vld [vmem:[%s1 + $0x20] sm:$0xff]
    %v41 = vld [vmem:[%s1 + $0x28] sm:$0xff]
    %v42 = vld [vmem:[%s1 + $0x30] sm:$0xff]
    %v43 = vld [vmem:[%s1 + $0x38] sm:$0xff]
    %v44 = vld [vmem:[%s1 + $0x40] sm:$0xff]
    %v45 = vld [vmem:[%s1 + $0x48] sm:$0xff]
    %v46 = vld [vmem:[%s1 + $0x50] sm:$0xff]
    %v47 = vld [vmem:[%s1 + $0x58] sm:$0xff]
    %v48 = vld [vmem:[%s1 + $0x60] sm:$0xff]
    %v49 = vld [vmem:[%s1 + $0x68] sm:$0xff]
    %v50 = vld [vmem:[%s1 + $0x70] sm:$0xff]
    %v51 = vld [vmem:[%s1 + $0x78] sm:$0xff]
    %vm52 = vcmask 261120
    %v54 = vsel %vm52, %v35, 0
    %56 = vmatprep.subr.mxu0 %v37
    %57 = vmatpush1.msra.mxu0 %v36
    %58 = vmatprep.subr.mxu0 %v41
    %59 = vmatpush1.msra.mxu0 %v40
    %60 = vmatprep.subr.mxu0 %v45
    %61 = vmatpush1.msra.mxu0 %v44
    %62 = vmatprep.subr.mxu0 %v49
    %63 = vmatpush1.msra.mxu0 %v48
    %64 = vmatprep.subr.mxu0 0.0
    %65 = vmatpush1.msra.mxu0 0.0
    %66 = vmatprep.subr.mxu0 0.0
    %67 = vmatpush1.msra.mxu0 0.0
    %68 = vmatprep.subr.mxu0 0.0
    %69 = vmatpush1.msra.mxu0 0.0
    %70 = vmatprep.subr.mxu0 0.0
    %71 = vmatpush1.msra.mxu0 0.0
    %72 = vmatprep.subr.mxu0 0.0
    %73 = vmatpush1.msra.mxu0 0.0
    %74 = vmatprep.subr.mxu0 0.0
    %75 = vmatpush1.msra.mxu0 0.0
    %76 = vmatprep.subr.mxu0 0.0
    %77 = vmatpush1.msra.mxu0 0.0
    %78 = vmatprep.subr.mxu0 0.0
    %79 = vmatpush1.msra.mxu0 0.0
    %80 = vmatprep.subr.mxu0 0.0
    %81 = vmatpush1.msra.mxu0 0.0
    %82 = vmatprep.subr.mxu0 0.0
    %83 = vmatpush1.msra.mxu0 0.0
    %84 = vmatprep.subr.mxu0 0.0
    %85 = vmatpush1.msra.mxu0 0.0
    %86 = vmatprep.subr.mxu0 0.0
    %87 = vmatpush1.msra.mxu0 0.0
    %88 = vmatprep.subr.mxu0 0.0
    %89 = vmatpush1.msra.mxu0 0.0
    %90 = vmatprep.subr.mxu0 0.0
    %91 = vmatpush1.msra.mxu0 0.0
    %92 = vmatprep.subr.mxu0 0.0
    %93 = vmatpush1.msra.mxu0 0.0
    %94 = vmatprep.subr.mxu0 0.0
    %95 = vmatpush1.msra.mxu0 0.0
    %96 = vmatprep.subr.mxu0 0.0
    %97 = vmatpush1.msra.mxu0 0.0
    %98 = vmatprep.subr.mxu0 0.0
    %99 = vmatpush1.msra.mxu0 0.0
    %100 = vmatprep.subr.mxu0 0.0
    %101 = vmatpush1.msra.mxu0 0.0
    %102 = vmatprep.subr.mxu0 0.0
    %103 = vmatpush1.msra.mxu0 0.0
    %104 = vmatprep.subr.mxu0 0.0
    %105 = vmatpush1.msra.mxu0 0.0
    %106 = vmatprep.subr.mxu0 0.0
    %107 = vmatpush1.msra.mxu0 0.0
    %108 = vmatprep.subr.mxu0 0.0
    %109 = vmatpush1.msra.mxu0 0.0
    %110 = vmatprep.subr.mxu0 0.0
    %111 = vmatpush1.msra.mxu0 0.0
    %112 = vmatprep.subr.mxu0 0.0
    %113 = vmatpush1.msra.mxu0 0.0
    %114 = vmatprep.subr.mxu0 0.0
    %115 = vmatpush1.msra.mxu0 0.0
    %116 = vmatprep.subr.mxu0 0.0
    %117 = vmatpush1.msra.mxu0 0.0
    %118 = vmatprep.subr.mxu0 0.0
    %119 = vmatpush1.msra.mxu0 0.0
    %120 = vmatprep.mubr.f32.mxu0 0.0
    %121 = vmatmul.mubr.f32.gmra.mrb[0].mxu0 %v54
    %v122 = vpop.f32.mrb[0].mxu0
    %v123 = vadd.f32 0.0, %v122
    %v124 = vpop.f32.mrb[0].mxu0
    %v125 = vadd.f32 0.0, %v124
    %126 = vdwg.mxu0
    %127 = vmatprep.subr.mxu0 %v39
    %128 = vmatpush1.msra.mxu0 %v38
    %129 = vmatprep.subr.mxu0 %v43
    %130 = vmatpush1.msra.mxu0 %v42
    %131 = vmatprep.subr.mxu0 %v47
    %132 = vmatpush1.msra.mxu0 %v46
    %133 = vmatprep.subr.mxu0 %v51
    %134 = vmatpush1.msra.mxu0 %v50
    %135 = vmatprep.subr.mxu0 0.0
    %136 = vmatpush1.msra.mxu0 0.0
    %137 = vmatprep.subr.mxu0 0.0
    %138 = vmatpush1.msra.mxu0 0.0
    %139 = vmatprep.subr.mxu0 0.0
    %140 = vmatpush1.msra.mxu0 0.0
    %141 = vmatprep.subr.mxu0 0.0
    %142 = vmatpush1.msra.mxu0 0.0
    %143 = vmatprep.subr.mxu0 0.0
    %144 = vmatpush1.msra.mxu0 0.0
    %145 = vmatprep.subr.mxu0 0.0
    %146 = vmatpush1.msra.mxu0 0.0
    %147 = vmatprep.subr.mxu0 0.0
    %148 = vmatpush1.msra.mxu0 0.0
    %149 = vmatprep.subr.mxu0 0.0
    %150 = vmatpush1.msra.mxu0 0.0
    %151 = vmatprep.subr.mxu0 0.0
    %152 = vmatpush1.msra.mxu0 0.0
    %153 = vmatprep.subr.mxu0 0.0
    %154 = vmatpush1.msra.mxu0 0.0
    %155 = vmatprep.subr.mxu0 0.0
    %156 = vmatpush1.msra.mxu0 0.0
    %157 = vmatprep.subr.mxu0 0.0
    %158 = vmatpush1.msra.mxu0 0.0
    %159 = vmatprep.subr.mxu0 0.0
    %160 = vmatpush1.msra.mxu0 0.0
    %161 = vmatprep.subr.mxu0 0.0
    %162 = vmatpush1.msra.mxu0 0.0
    %163 = vmatprep.subr.mxu0 0.0
    %164 = vmatpush1.msra.mxu0 0.0
    %165 = vmatprep.subr.mxu0 0.0
    %166 = vmatpush1.msra.mxu0 0.0
    %167 = vmatprep.subr.mxu0 0.0
    %168 = vmatpush1.msra.mxu0 0.0
    %169 = vmatprep.subr.mxu0 0.0
    %170 = vmatpush1.msra.mxu0 0.0
    %171 = vmatprep.subr.mxu0 0.0
    %172 = vmatpush1.msra.mxu0 0.0
    %173 = vmatprep.subr.mxu0 0.0
    %174 = vmatpush1.msra.mxu0 0.0
    %175 = vmatprep.subr.mxu0 0.0
    %176 = vmatpush1.msra.mxu0 0.0
    %177 = vmatprep.subr.mxu0 0.0
    %178 = vmatpush1.msra.mxu0 0.0
    %179 = vmatprep.subr.mxu0 0.0
    %180 = vmatpush1.msra.mxu0 0.0
    %181 = vmatprep.subr.mxu0 0.0
    %182 = vmatpush1.msra.mxu0 0.0
    %183 = vmatprep.subr.mxu0 0.0
    %184 = vmatpush1.msra.mxu0 0.0
    %185 = vmatprep.subr.mxu0 0.0
    %186 = vmatpush1.msra.mxu0 0.0
    %187 = vmatprep.subr.mxu0 0.0
    %188 = vmatpush1.msra.mxu0 0.0
    %189 = vmatprep.subr.mxu0 0.0
    %190 = vmatpush1.msra.mxu0 0.0
    %191 = vmatprep.mubr.f32.mxu0 0.0
    %192 = vmatmul.mubr.f32.gmra.mrb[0].mxu0 %v54
    %v193 = vpop.f32.mrb[0].mxu0
    %v194 = vadd.f32 0.0, %v193
    %v195 = vpop.f32.mrb[0].mxu0
    %v196 = vadd.f32 0.0, %v195
    %197 = vdwg.mxu0
    %v198 = vadd.f32 %v31, %v123
    %v199 = vadd.f32 %v32, %v125
    %v200 = vadd.f32 %v33, %v194
    %v201 = vadd.f32 %v34, %v196
    %202 = vst [vmem:[#allocation2] sm:$0xff] %v198
    %203 = vst [vmem:[#allocation2 + $0x8] sm:$0xff] %v199
    %204 = vst [vmem:[#allocation2 + $0x10] sm:$0xff] %v200
    %205 = vst [vmem:[#allocation2 + $0x18] sm:$0xff] %v201
    // Predicated region
    $region26: #{tpu_custom_call.1} parent=1 // pred_check
      %p206 = pneg %p23
    $region27: #{tpu_custom_call.1} parent=1 // pred_check_branch
      %208 = sbr.rel (%p206) target = $region29
    $region28: #{tpu_custom_call.1} parent=1 // pred_region
      %v209 = vld [vmem:[#allocation2] sm:$0xff]
      %v210 = vld [vmem:[#allocation2 + $0x8] sm:$0xff]
      %v211 = vld [vmem:[#allocation2 + $0x10] sm:$0xff]
      %v212 = vld [vmem:[#allocation2 + $0x18] sm:$0xff]
      %v213 = vld [vmem:[%s3] sm:$0xf]
      %v215 = vlaneseq
      %v216 = vshrl.u32 %v215, 7
      %v217 = vsub.s32 0, %v216
      %v218 = vrot.slane %v213, %v217
      %v219 = vlaneseq
      %v220 = vshrl.u32 %v219, 7
      %v221 = vsub.s32 1, %v220
      %v222 = vrot.slane %v213, %v221
      %v223 = vlaneseq
      %v224 = vshrl.u32 %v223, 7
      %v225 = vsub.s32 2, %v224
      %v226 = vrot.slane %v213, %v225
      %v227 = vlaneseq
      %v228 = vshrl.u32 %v227, 7
      %v229 = vsub.s32 3, %v228
      %v230 = vrot.slane %v213, %v229
      %v235 = vadd.f32 %v209, %v218
      %v236 = vadd.f32 %v210, %v222
      %v237 = vadd.f32 %v211, %v226
      %v238 = vadd.f32 %v212, %v230
      %v239 = vmax.f32 %v235, 0.0
      %v240 = vmax.f32 %v236, 0.0
      %v241 = vmax.f32 %v237, 0.0
      %v242 = vmax.f32 %v238, 0.0
      %v243 = vld [vmem:[%s2] sm:$0xff]
      %v244 = vld [vmem:[%s2 + $0x8] sm:$0xff]
      %v245 = vld [vmem:[%s2 + $0x10] sm:$0xff]
      %v246 = vld [vmem:[%s2 + $0x18] sm:$0xff]
      %v247 = vld [vmem:[%s2 + $0x20] sm:$0xff]
      %v248 = vld [vmem:[%s2 + $0x28] sm:$0xff]
      %v249 = vld [vmem:[%s2 + $0x30] sm:$0xff]
      %v250 = vld [vmem:[%s2 + $0x38] sm:$0xff]
      %v251 = vld [vmem:[%s2 + $0x40] sm:$0xff]
      %v252 = vld [vmem:[%s2 + $0x48] sm:$0xff]
      %v253 = vld [vmem:[%s2 + $0x50] sm:$0xff]
      %v254 = vld [vmem:[%s2 + $0x58] sm:$0xff]
      %v255 = vld [vmem:[%s2 + $0x60] sm:$0xff]
      %v256 = vld [vmem:[%s2 + $0x68] sm:$0xff]
      %v257 = vld [vmem:[%s2 + $0x70] sm:$0xff]
      %v258 = vld [vmem:[%s2 + $0x78] sm:$0xff]
      %v259 = vld [vmem:[%s2 + $0x80] sm:$0xff]
      %v260 = vld [vmem:[%s2 + $0x88] sm:$0xff]
      %v261 = vld [vmem:[%s2 + $0x90] sm:$0xff]
      %v262 = vld [vmem:[%s2 + $0x98] sm:$0xff]
      %v263 = vld [vmem:[%s2 + $0xa0] sm:$0xff]
      %v264 = vld [vmem:[%s2 + $0xa8] sm:$0xff]
      %v265 = vld [vmem:[%s2 + $0xb0] sm:$0xff]
      %v266 = vld [vmem:[%s2 + $0xb8] sm:$0xff]
      %v267 = vld [vmem:[%s2 + $0xc0] sm:$0xff]
      %v268 = vld [vmem:[%s2 + $0xc8] sm:$0xff]
      %v269 = vld [vmem:[%s2 + $0xd0] sm:$0xff]
      %v270 = vld [vmem:[%s2 + $0xd8] sm:$0xff]
      %v271 = vld [vmem:[%s2 + $0xe0] sm:$0xff]
      %v272 = vld [vmem:[%s2 + $0xe8] sm:$0xff]
      %v273 = vld [vmem:[%s2 + $0xf0] sm:$0xff]
      %v274 = vld [vmem:[%s2 + $0xf8] sm:$0xff]
      %v275 = vld [vmem:[%s2 + $0x100] sm:$0xff]
      %v276 = vld [vmem:[%s2 + $0x108] sm:$0xff]
      %v277 = vld [vmem:[%s2 + $0x110] sm:$0xff]
      %v278 = vld [vmem:[%s2 + $0x118] sm:$0xff]
      %v279 = vld [vmem:[%s2 + $0x120] sm:$0xff]
      %v280 = vld [vmem:[%s2 + $0x128] sm:$0xff]
      %v281 = vld [vmem:[%s2 + $0x130] sm:$0xff]
      %v282 = vld [vmem:[%s2 + $0x138] sm:$0xff]
      %v283 = vld [vmem:[%s2 + $0x140] sm:$0xff]
      %v284 = vld [vmem:[%s2 + $0x148] sm:$0xff]
      %v285 = vld [vmem:[%s2 + $0x150] sm:$0xff]
      %v286 = vld [vmem:[%s2 + $0x158] sm:$0xff]
      %v287 = vld [vmem:[%s2 + $0x160] sm:$0xff]
      %v288 = vld [vmem:[%s2 + $0x168] sm:$0xff]
      %v289 = vld [vmem:[%s2 + $0x170] sm:$0xff]
      %v290 = vld [vmem:[%s2 + $0x178] sm:$0xff]
      %v291 = vld [vmem:[%s2 + $0x180] sm:$0xff]
      %v292 = vld [vmem:[%s2 + $0x188] sm:$0xff]
      %v293 = vld [vmem:[%s2 + $0x190] sm:$0xff]
      %v294 = vld [vmem:[%s2 + $0x198] sm:$0xff]
      %v295 = vld [vmem:[%s2 + $0x1a0] sm:$0xff]
      %v296 = vld [vmem:[%s2 + $0x1a8] sm:$0xff]
      %v297 = vld [vmem:[%s2 + $0x1b0] sm:$0xff]
      %v298 = vld [vmem:[%s2 + $0x1b8] sm:$0xff]
      %v299 = vld [vmem:[%s2 + $0x1c0] sm:$0xff]
      %v300 = vld [vmem:[%s2 + $0x1c8] sm:$0xff]
      %v301 = vld [vmem:[%s2 + $0x1d0] sm:$0xff]
      %v302 = vld [vmem:[%s2 + $0x1d8] sm:$0xff]
      %v303 = vld [vmem:[%s2 + $0x1e0] sm:$0xff]
      %v304 = vld [vmem:[%s2 + $0x1e8] sm:$0xff]
      %v305 = vld [vmem:[%s2 + $0x1f0] sm:$0xff]
      %v306 = vld [vmem:[%s2 + $0x1f8] sm:$0xff]
      %v307 = vld [vmem:[%s4] sm:$0x1]
      %v309 = vlaneseq
      %v310 = vshrl.u32 %v309, 7
      %v311 = vsub.s32 0, %v310
      %v312 = vrot.slane %v307, %v311
      %314 = vmatprep.subr.mxu0 0.0
      %315 = vmatpush1.msra.mxu0 %v243
      %316 = vmatprep.subr.mxu0 0.0
      %317 = vmatpush1.msra.mxu0 %v244
      %318 = vmatprep.subr.mxu0 0.0
      %319 = vmatpush1.msra.mxu0 %v245
      %320 = vmatprep.subr.mxu0 0.0
      %321 = vmatpush1.msra.mxu0 %v246
      %322 = vmatprep.subr.mxu0 0.0
      %323 = vmatpush1.msra.mxu0 %v247
      %324 = vmatprep.subr.mxu0 0.0
      %325 = vmatpush1.msra.mxu0 %v248
      %326 = vmatprep.subr.mxu0 0.0
      %327 = vmatpush1.msra.mxu0 %v249
      %328 = vmatprep.subr.mxu0 0.0
      %329 = vmatpush1.msra.mxu0 %v250
      %330 = vmatprep.subr.mxu0 0.0
      %331 = vmatpush1.msra.mxu0 %v251
      %332 = vmatprep.subr.mxu0 0.0
      %333 = vmatpush1.msra.mxu0 %v252
      %334 = vmatprep.subr.mxu0 0.0
      %335 = vmatpush1.msra.mxu0 %v253
      %336 = vmatprep.subr.mxu0 0.0
      %337 = vmatpush1.msra.mxu0 %v254
      %338 = vmatprep.subr.mxu0 0.0
      %339 = vmatpush1.msra.mxu0 %v255
      %340 = vmatprep.subr.mxu0 0.0
      %341 = vmatpush1.msra.mxu0 %v256
      %342 = vmatprep.subr.mxu0 0.0
      %343 = vmatpush1.msra.mxu0 %v257
      %344 = vmatprep.subr.mxu0 0.0
      %345 = vmatpush1.msra.mxu0 %v258
      %346 = vmatprep.subr.mxu0 0.0
      %347 = vmatpush1.msra.mxu0 %v259
      %348 = vmatprep.subr.mxu0 0.0
      %349 = vmatpush1.msra.mxu0 %v260
      %350 = vmatprep.subr.mxu0 0.0
      %351 = vmatpush1.msra.mxu0 %v261
      %352 = vmatprep.subr.mxu0 0.0
      %353 = vmatpush1.msra.mxu0 %v262
      %354 = vmatprep.subr.mxu0 0.0
      %355 = vmatpush1.msra.mxu0 %v263
      %356 = vmatprep.subr.mxu0 0.0
      %357 = vmatpush1.msra.mxu0 %v264
      %358 = vmatprep.subr.mxu0 0.0
      %359 = vmatpush1.msra.mxu0 %v265
      %360 = vmatprep.subr.mxu0 0.0
      %361 = vmatpush1.msra.mxu0 %v266
      %362 = vmatprep.subr.mxu0 0.0
      %363 = vmatpush1.msra.mxu0 %v267
      %364 = vmatprep.subr.mxu0 0.0
      %365 = vmatpush1.msra.mxu0 %v268
      %366 = vmatprep.subr.mxu0 0.0
      %367 = vmatpush1.msra.mxu0 %v269
      %368 = vmatprep.subr.mxu0 0.0
      %369 = vmatpush1.msra.mxu0 %v270
      %370 = vmatprep.subr.mxu0 0.0
      %371 = vmatpush1.msra.mxu0 %v271
      %372 = vmatprep.subr.mxu0 0.0
      %373 = vmatpush1.msra.mxu0 %v272
      %374 = vmatprep.subr.mxu0 0.0
      %375 = vmatpush1.msra.mxu0 %v273
      %376 = vmatprep.subr.mxu0 0.0
      %377 = vmatpush1.msra.mxu0 %v274
      %378 = vmatprep.mubr.f32.mxu0 %v240
      %379 = vmatmul.mubr.f32.gmra.mrb[0].mxu0 %v239
      %v380 = vpop.f32.mrb[0].mxu0
      %v381 = vadd.f32 %v312, %v380
      %v382 = vpop.f32.mrb[0].mxu0
      %383 = vdwg.mxu0
      %384 = vmatprep.subr.mxu0 0.0
      %385 = vmatpush1.msra.mxu0 %v275
      %386 = vmatprep.subr.mxu0 0.0
      %387 = vmatpush1.msra.mxu0 %v276
      %388 = vmatprep.subr.mxu0 0.0
      %389 = vmatpush1.msra.mxu0 %v277
      %390 = vmatprep.subr.mxu0 0.0
      %391 = vmatpush1.msra.mxu0 %v278
      %392 = vmatprep.subr.mxu0 0.0
      %393 = vmatpush1.msra.mxu0 %v279
      %394 = vmatprep.subr.mxu0 0.0
      %395 = vmatpush1.msra.mxu0 %v280
      %396 = vmatprep.subr.mxu0 0.0
      %397 = vmatpush1.msra.mxu0 %v281
      %398 = vmatprep.subr.mxu0 0.0
      %399 = vmatpush1.msra.mxu0 %v282
      %400 = vmatprep.subr.mxu0 0.0
      %401 = vmatpush1.msra.mxu0 %v283
      %402 = vmatprep.subr.mxu0 0.0
      %403 = vmatpush1.msra.mxu0 %v284
      %404 = vmatprep.subr.mxu0 0.0
      %405 = vmatpush1.msra.mxu0 %v285
      %406 = vmatprep.subr.mxu0 0.0
      %407 = vmatpush1.msra.mxu0 %v286
      %408 = vmatprep.subr.mxu0 0.0
      %409 = vmatpush1.msra.mxu0 %v287
      %410 = vmatprep.subr.mxu0 0.0
      %411 = vmatpush1.msra.mxu0 %v288
      %412 = vmatprep.subr.mxu0 0.0
      %413 = vmatpush1.msra.mxu0 %v289
      %414 = vmatprep.subr.mxu0 0.0
      %415 = vmatpush1.msra.mxu0 %v290
      %416 = vmatprep.subr.mxu0 0.0
      %417 = vmatpush1.msra.mxu0 %v291
      %418 = vmatprep.subr.mxu0 0.0
      %419 = vmatpush1.msra.mxu0 %v292
      %420 = vmatprep.subr.mxu0 0.0
      %421 = vmatpush1.msra.mxu0 %v293
      %422 = vmatprep.subr.mxu0 0.0
      %423 = vmatpush1.msra.mxu0 %v294
      %424 = vmatprep.subr.mxu0 0.0
      %425 = vmatpush1.msra.mxu0 %v295
      %426 = vmatprep.subr.mxu0 0.0
      %427 = vmatpush1.msra.mxu0 %v296
      %428 = vmatprep.subr.mxu0 0.0
      %429 = vmatpush1.msra.mxu0 %v297
      %430 = vmatprep.subr.mxu0 0.0
      %431 = vmatpush1.msra.mxu0 %v298
      %432 = vmatprep.subr.mxu0 0.0
      %433 = vmatpush1.msra.mxu0 %v299
      %434 = vmatprep.subr.mxu0 0.0
      %435 = vmatpush1.msra.mxu0 %v300
      %436 = vmatprep.subr.mxu0 0.0
      %437 = vmatpush1.msra.mxu0 %v301
      %438 = vmatprep.subr.mxu0 0.0
      %439 = vmatpush1.msra.mxu0 %v302
      %440 = vmatprep.subr.mxu0 0.0
      %441 = vmatpush1.msra.mxu0 %v303
      %442 = vmatprep.subr.mxu0 0.0
      %443 = vmatpush1.msra.mxu0 %v304
      %444 = vmatprep.subr.mxu0 0.0
      %445 = vmatpush1.msra.mxu0 %v305
      %446 = vmatprep.subr.mxu0 0.0
      %447 = vmatpush1.msra.mxu0 %v306
      %448 = vmatprep.mubr.f32.mxu0 %v242
      %449 = vmatmul.mubr.f32.gmra.mrb[0].mxu0 %v241
      %v450 = vpop.f32.mrb[0].mxu0
      %v451 = vadd.f32 %v381, %v450
      %v452 = vpop.f32.mrb[0].mxu0
      %453 = vdwg.mxu0
      %vm454 = vcmask 64512
      %455 = vst.msk [vmem:[#allocation3] sm:$0xff] %vm454, %v451
      %457 = vrot.lane.b32.xlu0 %v451, 120
      %v458 = vpop.permute.xlu0 %457
      %vm460 = vcmask 7168
      %461 = vst.msk [vmem:[%s6] sm:$0xff] %vm460, %v458
    $region29: #{tpu_custom_call.1} parent=1 // pred_fallthru
      _
    // Predicated region
    $region30: #{tpu_custom_call.1} parent=1 // pred_check
      _
    $region31: #{tpu_custom_call.1} parent=1 // pred_check_branch
      %463 = sbr.rel (0) target = $region33
    $region32: #{tpu_custom_call.1} parent=1 // pred_region
      %s465 = ssub.s32 128, 128
      %466 = vsyncadd [#allocation4], %s465
      %s468 = sshll.u32 [#allocation3], 4
      %s469 = int_to_ptr.vmem [resolvable:$true] %s468
      %471 = dma.vmem_to_hbm [thread:$0]  %s469, 128, %s5, [#allocation4]
    $region33: #{tpu_custom_call.1} parent=1 // pred_fallthru
      _
    // Predicated region
    $region34: #{tpu_custom_call.1} parent=1 // pred_check
      _
    $region35: #{tpu_custom_call.1} parent=1 // pred_check_branch
      %473 = sbr.rel (0) target = $region37
    $region36: #{tpu_custom_call.1} parent=1 // pred_region
      _
    $region37: #{tpu_custom_call.1} parent=1 // pred_fallthru
      _
    // Predicated region
    $region38: #{tpu_custom_call.1} parent=1 // pred_check
      _
    $region39: #{tpu_custom_call.1} parent=1 // pred_check_branch
      %475 = sbr.rel (0) target = $region41
    $region40: #{tpu_custom_call.1} parent=1 // pred_region
      %476 = dma.done [#allocation4], 128
    $region41: #{tpu_custom_call.1} parent=1 // pred_fallthru
      _
    // Predicated region
    $region42: #{tpu_custom_call.1} parent=1 // pred_check
      _
    $region43: #{tpu_custom_call.1} parent=1 // pred_check_branch
      %478 = sbr.rel (0) target = $region45
    $region44: #{tpu_custom_call.1} parent=1 // pred_region
      _
    $region45: #{tpu_custom_call.1} parent=1 // pred_fallthru
      _
    %479 = vsyncpa [#allocation4], 1

// kernel: tpu_custom_call.1
$region0: #{tpu_custom_call.1}
  #allocation0 [shape = 'u32[]', space=smem, size = 0x4, offset = 0x4, fixed_abs, tag = 'smem constant byte address 0x4 - core index']
  #allocation1 [shape = 'u32[144,128]{1,0:T(1,128)}', space=vmem, size = 0x12000, scoped, tag = 'internal scratch']
  #allocation2 [shape = 'f32[8,512]{1,0:T(8,128)}', space=vmem, size = 0x4000, scoped, tag = 'scratch operand']
  %s0 = inlined_call_operand.vmem [shape: f32[8,32], index: 0, kind: input, shape index: {}]
  %s1 = inlined_call_operand.vmem [shape: f32[32,512], index: 1, kind: input, shape index: {}]
  %s2 = inlined_call_operand.vmem [shape: f32[512,9], index: 2, kind: input, shape index: {}]
  %s3 = inlined_call_operand.vmem [shape: f32[1,512], index: 3, kind: input, shape index: {}]
  %s4 = inlined_call_operand.vmem [shape: f32[1,9], index: 4, kind: input, shape index: {}]
  %s5 = inlined_call_operand.hbm [shape: f32[8,8], index: 5, kind: output, shape index: {0}]
  %s6 = inlined_call_operand.vmem [shape: f32[8,1], index: 6, kind: output, shape index: {1}]
  %7 = xla_tuple %s5, %s6
  %s8 = sld [smem:[#allocation0]]
  $region46: #{tpu_custom_call.1} parent=0
    _
  %s10 = ssub.s32 1, %s8
  %s11 = scalar_select 0, %s10, %s8
  $region1: #{tpu_custom_call.1} parent=0
    #allocation3 [shape = 'u8[4096]{0}', space=vmem, size = 0x1000, scoped, tag = 'output window, operand 0, single buffered']
    #allocation4 [shape = 's32[1]{0}', space=sflag, size = 0x4, scoped, tag = 'scoped memory for tpu_custom_call.1']
    %12 = vsyncpa [#allocation4], 0
    // Predicated region
    $region2: #{tpu_custom_call.1} parent=1 // pred_check
      _
    $region3: #{tpu_custom_call.1} parent=1 // pred_check_branch
      %14 = sbr.rel (0) target = $region5
    $region4: #{tpu_custom_call.1} parent=1 // pred_region
      _
    $region5: #{tpu_custom_call.1} parent=1 // pred_fallthru
      _
    // Predicated region
    $region6: #{tpu_custom_call.1} parent=1 // pred_check
      _
    $region7: #{tpu_custom_call.1} parent=1 // pred_check_branch
      %16 = sbr.rel (0) target = $region9
    $region8: #{tpu_custom_call.1} parent=1 // pred_region
      _
    $region9: #{tpu_custom_call.1} parent=1 // pred_fallthru
      _
    // Predicated region
    $region10: #{tpu_custom_call.1} parent=1 // pred_check
      _
    $region11: #{tpu_custom_call.1} parent=1 // pred_check_branch
      %18 = sbr.rel (0) target = $region13
    $region12: #{tpu_custom_call.1} parent=1 // pred_region
      _
    $region13: #{tpu_custom_call.1} parent=1 // pred_fallthru
      _
    // Predicated region
    $region14: #{tpu_custom_call.1} parent=1 // pred_check
      _
    $region15: #{tpu_custom_call.1} parent=1 // pred_check_branch
      %20 = sbr.rel (0) target = $region17
    $region16: #{tpu_custom_call.1} parent=1 // pred_region
      _
    $region17: #{tpu_custom_call.1} parent=1 // pred_fallthru
      _
    // Predicated region
    $region18: #{tpu_custom_call.1} parent=1 // pred_check
      _
    $region19: #{tpu_custom_call.1} parent=1 // pred_check_branch
      %22 = sbr.rel (0) target = $region21
    $region20: #{tpu_custom_call.1} parent=1 // pred_region
      _
    $region21: #{tpu_custom_call.1} parent=1 // pred_fallthru
      _
    %p23 = scmp.eq.s32.totalorder 0, 0
    // Predicated region
    $region22: #{tpu_custom_call.1} parent=1 // pred_check
      %p24 = pneg %p23
    $region23: #{tpu_custom_call.1} parent=1 // pred_check_branch
      %26 = sbr.rel (%p24) target = $region25
    $region24: #{tpu_custom_call.1} parent=1 // pred_region
      %27 = vst [vmem:[#allocation2] sm:$0xff] 0.0
      %28 = vst [vmem:[#allocation2 + $0x8] sm:$0xff] 0.0
      %29 = vst [vmem:[#allocation2 + $0x10] sm:$0xff] 0.0
      %30 = vst [vmem:[#allocation2 + $0x18] sm:$0xff] 0.0
    $region25: #{tpu_custom_call.1} parent=1 // pred_fallthru
      _
    %v31 = vld [vmem:[#allocation2] sm:$0xff]
    %v32 = vld [vmem:[#allocation2 + $0x8] sm:$0xff]
    %v33 = vld [vmem:[#allocation2 + $0x10] sm:$0xff]
    %v34 = vld [vmem:[#allocation2 + $0x18] sm:$0xff]
    %v35 = vld [vmem:[%s0] sm:$0xff]
    %v36 = vld [vmem:[%s1] sm:$0xff]
    %v37 = vld [vmem:[%s1 + $0x8] sm:$0xff]
    %v38 = vld [vmem:[%s1 + $0x10] sm:$0xff]
    %v39 = vld [vmem:[%s1 + $0x18] sm:$0xff]
    %v40 = vld [vmem:[%s1 + $0x20] sm:$0xff]
    %v41 = vld [vmem:[%s1 + $0x28] sm:$0xff]
    %v42 = vld [vmem:[%s1 + $0x30] sm:$0xff]
    %v43 = vld [vmem:[%s1 + $0x38] sm:$0xff]
    %v44 = vld [vmem:[%s1 + $0x40] sm:$0xff]
    %v45 = vld [vmem:[%s1 + $0x48] sm:$0xff]
    %v46 = vld [vmem:[%s1 + $0x50] sm:$0xff]
    %v47 = vld [vmem:[%s1 + $0x58] sm:$0xff]
    %v48 = vld [vmem:[%s1 + $0x60] sm:$0xff]
    %v49 = vld [vmem:[%s1 + $0x68] sm:$0xff]
    %v50 = vld [vmem:[%s1 + $0x70] sm:$0xff]
    %v51 = vld [vmem:[%s1 + $0x78] sm:$0xff]
    %vm52 = vcmask 261120
    %v54 = vsel %vm52, %v35, 0
    %56 = vmatprep.subr.mxu0 %v37
    %57 = vmatpush1.msra.mxu0 %v36
    %58 = vmatprep.subr.mxu0 %v41
    %59 = vmatpush1.msra.mxu0 %v40
    %60 = vmatprep.subr.mxu0 %v45
    %61 = vmatpush1.msra.mxu0 %v44
    %62 = vmatprep.subr.mxu0 %v49
    %63 = vmatpush1.msra.mxu0 %v48
    %64 = vmatprep.subr.mxu0 0.0
    %65 = vmatpush1.msra.mxu0 0.0
    %66 = vmatprep.subr.mxu0 0.0
    %67 = vmatpush1.msra.mxu0 0.0
    %68 = vmatprep.subr.mxu0 0.0
    %69 = vmatpush1.msra.mxu0 0.0
    %70 = vmatprep.subr.mxu0 0.0
    %71 = vmatpush1.msra.mxu0 0.0
    %72 = vmatprep.subr.mxu0 0.0
    %73 = vmatpush1.msra.mxu0 0.0
    %74 = vmatprep.subr.mxu0 0.0
    %75 = vmatpush1.msra.mxu0 0.0
    %76 = vmatprep.subr.mxu0 0.0
    %77 = vmatpush1.msra.mxu0 0.0
    %78 = vmatprep.subr.mxu0 0.0
    %79 = vmatpush1.msra.mxu0 0.0
    %80 = vmatprep.subr.mxu0 0.0
    %81 = vmatpush1.msra.mxu0 0.0
    %82 = vmatprep.subr.mxu0 0.0
    %83 = vmatpush1.msra.mxu0 0.0
    %84 = vmatprep.subr.mxu0 0.0
    %85 = vmatpush1.msra.mxu0 0.0
    %86 = vmatprep.subr.mxu0 0.0
    %87 = vmatpush1.msra.mxu0 0.0
    %88 = vmatprep.subr.mxu0 0.0
    %89 = vmatpush1.msra.mxu0 0.0
    %90 = vmatprep.subr.mxu0 0.0
    %91 = vmatpush1.msra.mxu0 0.0
    %92 = vmatprep.subr.mxu0 0.0
    %93 = vmatpush1.msra.mxu0 0.0
    %94 = vmatprep.subr.mxu0 0.0
    %95 = vmatpush1.msra.mxu0 0.0
    %96 = vmatprep.subr.mxu0 0.0
    %97 = vmatpush1.msra.mxu0 0.0
    %98 = vmatprep.subr.mxu0 0.0
    %99 = vmatpush1.msra.mxu0 0.0
    %100 = vmatprep.subr.mxu0 0.0
    %101 = vmatpush1.msra.mxu0 0.0
    %102 = vmatprep.subr.mxu0 0.0
    %103 = vmatpush1.msra.mxu0 0.0
    %104 = vmatprep.subr.mxu0 0.0
    %105 = vmatpush1.msra.mxu0 0.0
    %106 = vmatprep.subr.mxu0 0.0
    %107 = vmatpush1.msra.mxu0 0.0
    %108 = vmatprep.subr.mxu0 0.0
    %109 = vmatpush1.msra.mxu0 0.0
    %110 = vmatprep.subr.mxu0 0.0
    %111 = vmatpush1.msra.mxu0 0.0
    %112 = vmatprep.subr.mxu0 0.0
    %113 = vmatpush1.msra.mxu0 0.0
    %114 = vmatprep.subr.mxu0 0.0
    %115 = vmatpush1.msra.mxu0 0.0
    %116 = vmatprep.subr.mxu0 0.0
    %117 = vmatpush1.msra.mxu0 0.0
    %118 = vmatprep.subr.mxu0 0.0
    %119 = vmatpush1.msra.mxu0 0.0
    %120 = vmatprep.mubr.f32.mxu0 0.0
    %121 = vmatmul.mubr.f32.gmra.mrb[0].mxu0 %v54
    %v122 = vpop.f32.mrb[0].mxu0
    %v123 = vadd.f32 0.0, %v122
    %v124 = vpop.f32.mrb[0].mxu0
    %v125 = vadd.f32 0.0, %v124
    %126 = vdwg.mxu0
    %127 = vmatprep.subr.mxu0 %v39
    %128 = vmatpush1.msra.mxu0 %v38
    %129 = vmatprep.subr.mxu0 %v43
    %130 = vmatpush1.msra.mxu0 %v42
    %131 = vmatprep.subr.mxu0 %v47
    %132 = vmatpush1.msra.mxu0 %v46
    %133 = vmatprep.subr.mxu0 %v51
    %134 = vmatpush1.msra.mxu0 %v50
    %135 = vmatprep.subr.mxu0 0.0
    %136 = vmatpush1.msra.mxu0 0.0
    %137 = vmatprep.subr.mxu0 0.0
    %138 = vmatpush1.msra.mxu0 0.0
    %139 = vmatprep.subr.mxu0 0.0
    %140 = vmatpush1.msra.mxu0 0.0
    %141 = vmatprep.subr.mxu0 0.0
    %142 = vmatpush1.msra.mxu0 0.0
    %143 = vmatprep.subr.mxu0 0.0
    %144 = vmatpush1.msra.mxu0 0.0
    %145 = vmatprep.subr.mxu0 0.0
    %146 = vmatpush1.msra.mxu0 0.0
    %147 = vmatprep.subr.mxu0 0.0
    %148 = vmatpush1.msra.mxu0 0.0
    %149 = vmatprep.subr.mxu0 0.0
    %150 = vmatpush1.msra.mxu0 0.0
    %151 = vmatprep.subr.mxu0 0.0
    %152 = vmatpush1.msra.mxu0 0.0
    %153 = vmatprep.subr.mxu0 0.0
    %154 = vmatpush1.msra.mxu0 0.0
    %155 = vmatprep.subr.mxu0 0.0
    %156 = vmatpush1.msra.mxu0 0.0
    %157 = vmatprep.subr.mxu0 0.0
    %158 = vmatpush1.msra.mxu0 0.0
    %159 = vmatprep.subr.mxu0 0.0
    %160 = vmatpush1.msra.mxu0 0.0
    %161 = vmatprep.subr.mxu0 0.0
    %162 = vmatpush1.msra.mxu0 0.0
    %163 = vmatprep.subr.mxu0 0.0
    %164 = vmatpush1.msra.mxu0 0.0
    %165 = vmatprep.subr.mxu0 0.0
    %166 = vmatpush1.msra.mxu0 0.0
    %167 = vmatprep.subr.mxu0 0.0
    %168 = vmatpush1.msra.mxu0 0.0
    %169 = vmatprep.subr.mxu0 0.0
    %170 = vmatpush1.msra.mxu0 0.0
    %171 = vmatprep.subr.mxu0 0.0
    %172 = vmatpush1.msra.mxu0 0.0
    %173 = vmatprep.subr.mxu0 0.0
    %174 = vmatpush1.msra.mxu0 0.0
    %175 = vmatprep.subr.mxu0 0.0
    %176 = vmatpush1.msra.mxu0 0.0
    %177 = vmatprep.subr.mxu0 0.0
    %178 = vmatpush1.msra.mxu0 0.0
    %179 = vmatprep.subr.mxu0 0.0
    %180 = vmatpush1.msra.mxu0 0.0
    %181 = vmatprep.subr.mxu0 0.0
    %182 = vmatpush1.msra.mxu0 0.0
    %183 = vmatprep.subr.mxu0 0.0
    %184 = vmatpush1.msra.mxu0 0.0
    %185 = vmatprep.subr.mxu0 0.0
    %186 = vmatpush1.msra.mxu0 0.0
    %187 = vmatprep.subr.mxu0 0.0
    %188 = vmatpush1.msra.mxu0 0.0
    %189 = vmatprep.subr.mxu0 0.0
    %190 = vmatpush1.msra.mxu0 0.0
    %191 = vmatprep.mubr.f32.mxu0 0.0
    %192 = vmatmul.mubr.f32.gmra.mrb[0].mxu0 %v54
    %v193 = vpop.f32.mrb[0].mxu0
    %v194 = vadd.f32 0.0, %v193
    %v195 = vpop.f32.mrb[0].mxu0
    %v196 = vadd.f32 0.0, %v195
    %197 = vdwg.mxu0
    %v198 = vadd.f32 %v31, %v123
    %v199 = vadd.f32 %v32, %v125
    %v200 = vadd.f32 %v33, %v194
    %v201 = vadd.f32 %v34, %v196
    %202 = vst [vmem:[#allocation2] sm:$0xff] %v198
    %203 = vst [vmem:[#allocation2 + $0x8] sm:$0xff] %v199
    %204 = vst [vmem:[#allocation2 + $0x10] sm:$0xff] %v200
    %205 = vst [vmem:[#allocation2 + $0x18] sm:$0xff] %v201
    // Predicated region
    $region26: #{tpu_custom_call.1} parent=1 // pred_check
      %p206 = pneg %p23
    $region27: #{tpu_custom_call.1} parent=1 // pred_check_branch
      %208 = sbr.rel (%p206) target = $region29
    $region28: #{tpu_custom_call.1} parent=1 // pred_region
      %v209 = vld [vmem:[#allocation2] sm:$0xff]
      %v210 = vld [vmem:[#allocation2 + $0x8] sm:$0xff]
      %v211 = vld [vmem:[#allocation2 + $0x10] sm:$0xff]
      %v212 = vld [vmem:[#allocation2 + $0x18] sm:$0xff]
      %v213 = vld [vmem:[%s3] sm:$0xf]
      %v215 = vlaneseq
      %v216 = vshrl.u32 %v215, 7
      %v217 = vsub.s32 0, %v216
      %v218 = vrot.slane %v213, %v217
      %v219 = vlaneseq
      %v220 = vshrl.u32 %v219, 7
      %v221 = vsub.s32 1, %v220
      %v222 = vrot.slane %v213, %v221
      %v223 = vlaneseq
      %v224 = vshrl.u32 %v223, 7
      %v225 = vsub.s32 2, %v224
      %v226 = vrot.slane %v213, %v225
      %v227 = vlaneseq
      %v228 = vshrl.u32 %v227, 7
      %v229 = vsub.s32 3, %v228
      %v230 = vrot.slane %v213, %v229
      %v235 = vadd.f32 %v209, %v218
      %v236 = vadd.f32 %v210, %v222
      %v237 = vadd.f32 %v211, %v226
      %v238 = vadd.f32 %v212, %v230
      %v239 = vmax.f32 %v235, 0.0
      %v240 = vmax.f32 %v236, 0.0
      %v241 = vmax.f32 %v237, 0.0
      %v242 = vmax.f32 %v238, 0.0
      %v243 = vld [vmem:[%s2] sm:$0xff]
      %v244 = vld [vmem:[%s2 + $0x8] sm:$0xff]
      %v245 = vld [vmem:[%s2 + $0x10] sm:$0xff]
      %v246 = vld [vmem:[%s2 + $0x18] sm:$0xff]
      %v247 = vld [vmem:[%s2 + $0x20] sm:$0xff]
      %v248 = vld [vmem:[%s2 + $0x28] sm:$0xff]
      %v249 = vld [vmem:[%s2 + $0x30] sm:$0xff]
      %v250 = vld [vmem:[%s2 + $0x38] sm:$0xff]
      %v251 = vld [vmem:[%s2 + $0x40] sm:$0xff]
      %v252 = vld [vmem:[%s2 + $0x48] sm:$0xff]
      %v253 = vld [vmem:[%s2 + $0x50] sm:$0xff]
      %v254 = vld [vmem:[%s2 + $0x58] sm:$0xff]
      %v255 = vld [vmem:[%s2 + $0x60] sm:$0xff]
      %v256 = vld [vmem:[%s2 + $0x68] sm:$0xff]
      %v257 = vld [vmem:[%s2 + $0x70] sm:$0xff]
      %v258 = vld [vmem:[%s2 + $0x78] sm:$0xff]
      %v259 = vld [vmem:[%s2 + $0x80] sm:$0xff]
      %v260 = vld [vmem:[%s2 + $0x88] sm:$0xff]
      %v261 = vld [vmem:[%s2 + $0x90] sm:$0xff]
      %v262 = vld [vmem:[%s2 + $0x98] sm:$0xff]
      %v263 = vld [vmem:[%s2 + $0xa0] sm:$0xff]
      %v264 = vld [vmem:[%s2 + $0xa8] sm:$0xff]
      %v265 = vld [vmem:[%s2 + $0xb0] sm:$0xff]
      %v266 = vld [vmem:[%s2 + $0xb8] sm:$0xff]
      %v267 = vld [vmem:[%s2 + $0xc0] sm:$0xff]
      %v268 = vld [vmem:[%s2 + $0xc8] sm:$0xff]
      %v269 = vld [vmem:[%s2 + $0xd0] sm:$0xff]
      %v270 = vld [vmem:[%s2 + $0xd8] sm:$0xff]
      %v271 = vld [vmem:[%s2 + $0xe0] sm:$0xff]
      %v272 = vld [vmem:[%s2 + $0xe8] sm:$0xff]
      %v273 = vld [vmem:[%s2 + $0xf0] sm:$0xff]
      %v274 = vld [vmem:[%s2 + $0xf8] sm:$0xff]
      %v275 = vld [vmem:[%s2 + $0x100] sm:$0xff]
      %v276 = vld [vmem:[%s2 + $0x108] sm:$0xff]
      %v277 = vld [vmem:[%s2 + $0x110] sm:$0xff]
      %v278 = vld [vmem:[%s2 + $0x118] sm:$0xff]
      %v279 = vld [vmem:[%s2 + $0x120] sm:$0xff]
      %v280 = vld [vmem:[%s2 + $0x128] sm:$0xff]
      %v281 = vld [vmem:[%s2 + $0x130] sm:$0xff]
      %v282 = vld [vmem:[%s2 + $0x138] sm:$0xff]
      %v283 = vld [vmem:[%s2 + $0x140] sm:$0xff]
      %v284 = vld [vmem:[%s2 + $0x148] sm:$0xff]
      %v285 = vld [vmem:[%s2 + $0x150] sm:$0xff]
      %v286 = vld [vmem:[%s2 + $0x158] sm:$0xff]
      %v287 = vld [vmem:[%s2 + $0x160] sm:$0xff]
      %v288 = vld [vmem:[%s2 + $0x168] sm:$0xff]
      %v289 = vld [vmem:[%s2 + $0x170] sm:$0xff]
      %v290 = vld [vmem:[%s2 + $0x178] sm:$0xff]
      %v291 = vld [vmem:[%s2 + $0x180] sm:$0xff]
      %v292 = vld [vmem:[%s2 + $0x188] sm:$0xff]
      %v293 = vld [vmem:[%s2 + $0x190] sm:$0xff]
      %v294 = vld [vmem:[%s2 + $0x198] sm:$0xff]
      %v295 = vld [vmem:[%s2 + $0x1a0] sm:$0xff]
      %v296 = vld [vmem:[%s2 + $0x1a8] sm:$0xff]
      %v297 = vld [vmem:[%s2 + $0x1b0] sm:$0xff]
      %v298 = vld [vmem:[%s2 + $0x1b8] sm:$0xff]
      %v299 = vld [vmem:[%s2 + $0x1c0] sm:$0xff]
      %v300 = vld [vmem:[%s2 + $0x1c8] sm:$0xff]
      %v301 = vld [vmem:[%s2 + $0x1d0] sm:$0xff]
      %v302 = vld [vmem:[%s2 + $0x1d8] sm:$0xff]
      %v303 = vld [vmem:[%s2 + $0x1e0] sm:$0xff]
      %v304 = vld [vmem:[%s2 + $0x1e8] sm:$0xff]
      %v305 = vld [vmem:[%s2 + $0x1f0] sm:$0xff]
      %v306 = vld [vmem:[%s2 + $0x1f8] sm:$0xff]
      %v307 = vld [vmem:[%s4] sm:$0x1]
      %v309 = vlaneseq
      %v310 = vshrl.u32 %v309, 7
      %v311 = vsub.s32 0, %v310
      %v312 = vrot.slane %v307, %v311
      %314 = vmatprep.subr.mxu0 0.0
      %315 = vmatpush1.msra.mxu0 %v243
      %316 = vmatprep.subr.mxu0 0.0
      %317 = vmatpush1.msra.mxu0 %v244
      %318 = vmatprep.subr.mxu0 0.0
      %319 = vmatpush1.msra.mxu0 %v245
      %320 = vmatprep.subr.mxu0 0.0
      %321 = vmatpush1.msra.mxu0 %v246
      %322 = vmatprep.subr.mxu0 0.0
      %323 = vmatpush1.msra.mxu0 %v247
      %324 = vmatprep.subr.mxu0 0.0
      %325 = vmatpush1.msra.mxu0 %v248
      %326 = vmatprep.subr.mxu0 0.0
      %327 = vmatpush1.msra.mxu0 %v249
      %328 = vmatprep.subr.mxu0 0.0
      %329 = vmatpush1.msra.mxu0 %v250
      %330 = vmatprep.subr.mxu0 0.0
      %331 = vmatpush1.msra.mxu0 %v251
      %332 = vmatprep.subr.mxu0 0.0
      %333 = vmatpush1.msra.mxu0 %v252
      %334 = vmatprep.subr.mxu0 0.0
      %335 = vmatpush1.msra.mxu0 %v253
      %336 = vmatprep.subr.mxu0 0.0
      %337 = vmatpush1.msra.mxu0 %v254
      %338 = vmatprep.subr.mxu0 0.0
      %339 = vmatpush1.msra.mxu0 %v255
      %340 = vmatprep.subr.mxu0 0.0
      %341 = vmatpush1.msra.mxu0 %v256
      %342 = vmatprep.subr.mxu0 0.0
      %343 = vmatpush1.msra.mxu0 %v257
      %344 = vmatprep.subr.mxu0 0.0
      %345 = vmatpush1.msra.mxu0 %v258
      %346 = vmatprep.subr.mxu0 0.0
      %347 = vmatpush1.msra.mxu0 %v259
      %348 = vmatprep.subr.mxu0 0.0
      %349 = vmatpush1.msra.mxu0 %v260
      %350 = vmatprep.subr.mxu0 0.0
      %351 = vmatpush1.msra.mxu0 %v261
      %352 = vmatprep.subr.mxu0 0.0
      %353 = vmatpush1.msra.mxu0 %v262
      %354 = vmatprep.subr.mxu0 0.0
      %355 = vmatpush1.msra.mxu0 %v263
      %356 = vmatprep.subr.mxu0 0.0
      %357 = vmatpush1.msra.mxu0 %v264
      %358 = vmatprep.subr.mxu0 0.0
      %359 = vmatpush1.msra.mxu0 %v265
      %360 = vmatprep.subr.mxu0 0.0
      %361 = vmatpush1.msra.mxu0 %v266
      %362 = vmatprep.subr.mxu0 0.0
      %363 = vmatpush1.msra.mxu0 %v267
      %364 = vmatprep.subr.mxu0 0.0
      %365 = vmatpush1.msra.mxu0 %v268
      %366 = vmatprep.subr.mxu0 0.0
      %367 = vmatpush1.msra.mxu0 %v269
      %368 = vmatprep.subr.mxu0 0.0
      %369 = vmatpush1.msra.mxu0 %v270
      %370 = vmatprep.subr.mxu0 0.0
      %371 = vmatpush1.msra.mxu0 %v271
      %372 = vmatprep.subr.mxu0 0.0
      %373 = vmatpush1.msra.mxu0 %v272
      %374 = vmatprep.subr.mxu0 0.0
      %375 = vmatpush1.msra.mxu0 %v273
      %376 = vmatprep.subr.mxu0 0.0
      %377 = vmatpush1.msra.mxu0 %v274
      %378 = vmatprep.mubr.f32.mxu0 %v240
      %379 = vmatmul.mubr.f32.gmra.mrb[0].mxu0 %v239
      %v380 = vpop.f32.mrb[0].mxu0
      %v381 = vadd.f32 %v312, %v380
      %v382 = vpop.f32.mrb[0].mxu0
      %383 = vdwg.mxu0
      %384 = vmatprep.subr.mxu0 0.0
      %385 = vmatpush1.msra.mxu0 %v275
      %386 = vmatprep.subr.mxu0 0.0
      %387 = vmatpush1.msra.mxu0 %v276
      %388 = vmatprep.subr.mxu0 0.0
      %389 = vmatpush1.msra.mxu0 %v277
      %390 = vmatprep.subr.mxu0 0.0
      %391 = vmatpush1.msra.mxu0 %v278
      %392 = vmatprep.subr.mxu0 0.0
      %393 = vmatpush1.msra.mxu0 %v279
      %394 = vmatprep.subr.mxu0 0.0
      %395 = vmatpush1.msra.mxu0 %v280
      %396 = vmatprep.subr.mxu0 0.0
      %397 = vmatpush1.msra.mxu0 %v281
      %398 = vmatprep.subr.mxu0 0.0
      %399 = vmatpush1.msra.mxu0 %v282
      %400 = vmatprep.subr.mxu0 0.0
      %401 = vmatpush1.msra.mxu0 %v283
      %402 = vmatprep.subr.mxu0 0.0
      %403 = vmatpush1.msra.mxu0 %v284
      %404 = vmatprep.subr.mxu0 0.0
      %405 = vmatpush1.msra.mxu0 %v285
      %406 = vmatprep.subr.mxu0 0.0
      %407 = vmatpush1.msra.mxu0 %v286
      %408 = vmatprep.subr.mxu0 0.0
      %409 = vmatpush1.msra.mxu0 %v287
      %410 = vmatprep.subr.mxu0 0.0
      %411 = vmatpush1.msra.mxu0 %v288
      %412 = vmatprep.subr.mxu0 0.0
      %413 = vmatpush1.msra.mxu0 %v289
      %414 = vmatprep.subr.mxu0 0.0
      %415 = vmatpush1.msra.mxu0 %v290
      %416 = vmatprep.subr.mxu0 0.0
      %417 = vmatpush1.msra.mxu0 %v291
      %418 = vmatprep.subr.mxu0 0.0
      %419 = vmatpush1.msra.mxu0 %v292
      %420 = vmatprep.subr.mxu0 0.0
      %421 = vmatpush1.msra.mxu0 %v293
      %422 = vmatprep.subr.mxu0 0.0
      %423 = vmatpush1.msra.mxu0 %v294
      %424 = vmatprep.subr.mxu0 0.0
      %425 = vmatpush1.msra.mxu0 %v295
      %426 = vmatprep.subr.mxu0 0.0
      %427 = vmatpush1.msra.mxu0 %v296
      %428 = vmatprep.subr.mxu0 0.0
      %429 = vmatpush1.msra.mxu0 %v297
      %430 = vmatprep.subr.mxu0 0.0
      %431 = vmatpush1.msra.mxu0 %v298
      %432 = vmatprep.subr.mxu0 0.0
      %433 = vmatpush1.msra.mxu0 %v299
      %434 = vmatprep.subr.mxu0 0.0
      %435 = vmatpush1.msra.mxu0 %v300
      %436 = vmatprep.subr.mxu0 0.0
      %437 = vmatpush1.msra.mxu0 %v301
      %438 = vmatprep.subr.mxu0 0.0
      %439 = vmatpush1.msra.mxu0 %v302
      %440 = vmatprep.subr.mxu0 0.0
      %441 = vmatpush1.msra.mxu0 %v303
      %442 = vmatprep.subr.mxu0 0.0
      %443 = vmatpush1.msra.mxu0 %v304
      %444 = vmatprep.subr.mxu0 0.0
      %445 = vmatpush1.msra.mxu0 %v305
      %446 = vmatprep.subr.mxu0 0.0
      %447 = vmatpush1.msra.mxu0 %v306
      %448 = vmatprep.mubr.f32.mxu0 %v242
      %449 = vmatmul.mubr.f32.gmra.mrb[0].mxu0 %v241
      %v450 = vpop.f32.mrb[0].mxu0
      %v451 = vadd.f32 %v381, %v450
      %v452 = vpop.f32.mrb[0].mxu0
      %453 = vdwg.mxu0
      %vm454 = vcmask 64512
      %455 = vst.msk [vmem:[#allocation3] sm:$0xff] %vm454, %v451
      %457 = vrot.lane.b32.xlu0 %v451, 120
      %v458 = vpop.permute.xlu0 %457
      %vm460 = vcmask 7168
      %461 = vst.msk [vmem:[%s6] sm:$0xff] %vm460, %v458
    $region29: #{tpu_custom_call.1} parent=1 // pred_fallthru
      _
    // Predicated region
    $region30: #{tpu_custom_call.1} parent=1 // pred_check
      _
    $region31: #{tpu_custom_call.1} parent=1 // pred_check_branch
      %463 = sbr.rel (0) target = $region33
    $region32: #{tpu_custom_call.1} parent=1 // pred_region
      %s465 = ssub.s32 128, 128
      %466 = vsyncadd [#allocation4], %s465
      %s468 = sshll.u32 [#allocation3], 4
      %s469 = int_to_ptr.vmem [resolvable:$true] %s468
      %471 = dma.vmem_to_hbm [thread:$0]  %s469, 128, %s5, [#allocation4]
    $region33: #{tpu_custom_call.1} parent=1 // pred_fallthru
      _
    // Predicated region
    $region34: #{tpu_custom_call.1} parent=1 // pred_check
      _
    $region35: #{tpu_custom_call.1} parent=1 // pred_check_branch
      %473 = sbr.rel (0) target = $region37
    $region36: #{tpu_custom_call.1} parent=1 // pred_region
      _
    $region37: #{tpu_custom_call.1} parent=1 // pred_fallthru
      _
    // Predicated region
    $region38: #{tpu_custom_call.1} parent=1 // pred_check
      _
    $region39: #{tpu_custom_call.1} parent=1 // pred_check_branch
      %475 = sbr.rel (0) target = $region41
    $region40: #{tpu_custom_call.1} parent=1 // pred_region
      %476 = dma.done [#allocation4], 128
    $region41: #{tpu_custom_call.1} parent=1 // pred_fallthru
      _
    // Predicated region
    $region42: #{tpu_custom_call.1} parent=1 // pred_check
      _
    $region43: #{tpu_custom_call.1} parent=1 // pred_check_branch
      %478 = sbr.rel (0) target = $region45
    $region44: #{tpu_custom_call.1} parent=1 // pred_region
      _
    $region45: #{tpu_custom_call.1} parent=1 // pred_fallthru
      _
    %479 = vsyncpa [#allocation4], 1

</llo_original>
